<compile_context>
chip_gen: v7x
topology: tpu7x:2x2x1
jax: 0.10.0
libtpu: 0.0.40
codegen_flags: <defaults>
</compile_context>

<pallas_src>
import functools

import jax
import jax.numpy as jnp
from jax.experimental import pallas as pl
from jax.experimental.pallas import tpu as pltpu


def _res_block_kernel(x_ref, w1_ref, b1_ref, w2_ref, b2_ref, o_ref, *,
                      has_downsample, neg_slope, seq_len, c_in, tlp):
    """Fused conv1+BN+LeakyReLU+conv2+shortcut+MaxPool1d(3), polyphase form.

    x_ref  : (1, 1, 3*C_in, tlp + 4) phase-major input tile; rows [r*C_in:(r+1)*C_in]
             hold phase r, column b holds x[3*(t*tlp + b - 2) + r].
    w1_ref : (C_out, 3*C_in)              conv1 weights, BN folded, taps flattened.
    b1_ref : (C_out, 1)                   conv1 bias, BN folded.
    w2_ref : (C_out, 3*C_out [+ C_in])    conv2 weights (+ folded 1x1 downsample).
    b2_ref : (C_out, 1)                   conv2 bias (+ downsample bias).
    o_ref  : (1, C_out, tlp)              pooled output tile (lane-dense).
    """
    t = pl.program_id(1)
    base = 3 * t * tlp          # global position of out[3*t*tlp]
    th = tlp + 2                # conv1-output columns computed per phase (j in [-1, tlp])

    xf = x_ref[0, 0]            # (3*C_in, tlp + 4)
    X0 = xf[0 * c_in:1 * c_in, :]
    X1 = xf[1 * c_in:2 * c_in, :]
    X2 = xf[2 * c_in:3 * c_in, :]

    w1 = w1_ref[...]
    b1 = b1_ref[...]
    w2 = w2_ref[...]
    b2 = b2_ref[...]

    col = jax.lax.broadcasted_iota(jnp.int32, (1, th), 1)

    def conv1_phase(xs, r):
        # xs: (3*C_in, th) stacked taps for phase r.
        h = jnp.dot(w1, xs, preferred_element_type=jnp.float32) + b1
        h = jnp.where(h >= 0, h, neg_slope * h)            # LeakyReLU(0.3)
        # conv2 zero-pads its input at the true sequence boundaries: zero h
        # outside [0, L).  Column a of phase r is global position base-3+r+3a.
        g = base - 3 + r + 3 * col
        return h * ((g >= 0) & (g < seq_len)).astype(h.dtype)

    # ---- conv1 (BN folded), one MXU matmul per output phase -----------------
    xs0 = jnp.concatenate([X2[:, 0:th], X0[:, 1:th + 1], X1[:, 1:th + 1]], axis=0)
    xs1 = jnp.concatenate([X0[:, 1:th + 1], X1[:, 1:th + 1], X2[:, 1:th + 1]], axis=0)
    xs2 = jnp.concatenate([X1[:, 1:th + 1], X2[:, 1:th + 1], X0[:, 2:th + 2]], axis=0)
    H0 = conv1_phase(xs0, 0)
    H1 = conv1_phase(xs1, 1)
    H2 = conv1_phase(xs2, 2)

    # ---- conv2 (+ folded 1x1 downsample) per output phase --------------------
    Xc = (X0[:, 2:tlp + 2], X1[:, 2:tlp + 2], X2[:, 2:tlp + 2])
    hs = (
        jnp.concatenate([H2[:, 0:tlp], H0[:, 1:tlp + 1], H1[:, 1:tlp + 1]], axis=0),
        jnp.concatenate([H0[:, 1:tlp + 1], H1[:, 1:tlp + 1], H2[:, 1:tlp + 1]], axis=0),
        jnp.concatenate([H1[:, 1:tlp + 1], H2[:, 1:tlp + 1], H0[:, 2:tlp + 2]], axis=0),
    )
    outs = []
    for r in range(3):
        rhs = hs[r]
        if has_downsample:
            rhs = jnp.concatenate([rhs, Xc[r]], axis=0)   # shortcut fused into the dot
        o = jnp.dot(w2, rhs, preferred_element_type=jnp.float32) + b2
        if not has_downsample:
            o = o + Xc[r]                                  # identity shortcut
        outs.append(o)

    # ---- MaxPool1d(3): pure elementwise max over the three phases -----------
    pooled = jnp.maximum(jnp.maximum(outs[0], outs[1]), outs[2])
    o_ref[0] = pooled.astype(o_ref.dtype)


def residual_block(x, params, *, neg_slope=0.3, eps=1e-5, block_lp=512):
    """RawNet2 Residual_block forward (eval mode).  x: (N, C_in, L) -> (N, C_out, L//3).

    block_lp = pooled-output tile width.  When the sequence is tiled (Lp > block_lp)
    it must be a multiple of 128 so output stores stay lane-dense.
    """
    N, C_in, L = x.shape
    w1 = params["w1"].astype(jnp.float32)                    # (C_out, C_in, 3)
    C_out = w1.shape[0]
    has_down = C_in != C_out

    Lp = L // 3
    if Lp <= block_lp:
        tlp, n_t = Lp, 1
    else:
        assert block_lp % 128 == 0, "tiled pooled block width must be lane-dense"
        tlp, n_t = block_lp, pl.cdiv(Lp, block_lp)
    lp_pad = n_t * tlp
    TX = tlp + 4                                             # per-phase tile width (halo 4)

    # ---- parameter glue (reshapes / BN folding / shortcut folding, once) ----
    scale = params["bn_gamma"].astype(jnp.float32) / jnp.sqrt(
        params["bn_var"].astype(jnp.float32) + eps)
    shift = params["bn_beta"].astype(jnp.float32) - params["bn_mean"].astype(jnp.float32) * scale
    w1f = w1 * scale[:, None, None]                               # BN folded into conv1
    b1f = (params["b1"].astype(jnp.float32) * scale + shift).reshape(C_out, 1)
    w1s = jnp.transpose(w1f, (0, 2, 1)).reshape(C_out, 3 * C_in)  # taps flattened
    w2 = params["w2"].astype(jnp.float32)
    w2s = jnp.transpose(w2, (0, 2, 1)).reshape(C_out, 3 * C_out)
    b2 = params["b2"].astype(jnp.float32).reshape(C_out, 1)
    if has_down:
        wd = params["wd"][:, :, 0].astype(jnp.float32)            # (C_out, C_in)
        bd = params["bd"].astype(jnp.float32).reshape(C_out, 1)
        w2s = jnp.concatenate([w2s, wd], axis=1)                  # fold 1x1 shortcut into conv2
        b2 = b2 + bd
    KW = w2s.shape[1]

    # ---- polyphase, halo'd, L-tiled staging of the input ---------------------
    # x_tiles[n, t, r*C_in + c, b] = x[n, c, 3*(t*tlp + b - 2) + r]  (zeros outside [0, L))
    Lpad = 3 * lp_pad + 12
    x32 = x.astype(jnp.float32)
    x_pad = jnp.pad(x32, ((0, 0), (0, 0), (6, Lpad - 6 - L)))
    xq = x_pad[:, :, :3 * (lp_pad + 4)].reshape(N, C_in, lp_pad + 4, 3)
    tiles = [xq[:, :, t * tlp: t * tlp + TX, :] for t in range(n_t)]
    x_tiles = jnp.stack(tiles, axis=1)                            # (N, n_t, C_in, TX, 3)
    x_tiles = jnp.transpose(x_tiles, (0, 1, 4, 2, 3)).reshape(N, n_t, 3 * C_in, TX)

    kern = functools.partial(_res_block_kernel, has_downsample=has_down,
                             neg_slope=neg_slope, seq_len=L, c_in=C_in, tlp=tlp)

    out = pl.pallas_call(
        kern,
        out_shape=jax.ShapeDtypeStruct((N, C_out, lp_pad), jnp.float32),
        grid=(N, n_t),
        in_specs=[
            pl.BlockSpec((1, 1, 3 * C_in, TX), lambda n, t: (n, t, 0, 0)),
            pl.BlockSpec((C_out, 3 * C_in), lambda n, t: (0, 0)),
            pl.BlockSpec((C_out, 1), lambda n, t: (0, 0)),
            pl.BlockSpec((C_out, KW), lambda n, t: (0, 0)),
            pl.BlockSpec((C_out, 1), lambda n, t: (0, 0)),
        ],
        out_specs=pl.BlockSpec((1, C_out, tlp), lambda n, t: (n, 0, t)),
        compiler_params=pltpu.CompilerParams(
            dimension_semantics=("parallel", "parallel"),
            vmem_limit_bytes=48 * 1024 * 1024),
    )(x_tiles, w1s, b1f, w2s, b2)
    return out[:, :, :Lp]


def _reference(x, params, *, neg_slope=0.3, eps=1e-5):
    """Pure-JAX reference matching PyTorch eval-mode semantics."""
    hi = jax.lax.Precision.HIGHEST

    def conv1d(h, w, b, pad):
        out = jax.lax.conv_general_dilated(
            h, w, window_strides=(1,), padding=[(pad, pad)],
            dimension_numbers=("NCH", "OIH", "NCH"), precision=hi)
        return out + b[None, :, None]

    h = conv1d(x, params["w1"], params["b1"], 1)
    h = ((h - params["bn_mean"][None, :, None])
         / jnp.sqrt(params["bn_var"][None, :, None] + eps)
         * params["bn_gamma"][None, :, None] + params["bn_beta"][None, :, None])
    h = jnp.where(h >= 0, h, neg_slope * h)
    out = conv1d(h, params["w2"], params["b2"], 1)
    if params["w1"].shape[0] != params["w1"].shape[1]:
        ident = conv1d(x, params["wd"], params["bd"], 0)
    else:
        ident = x
    out = out + ident
    N, C, L = out.shape
    Lp = L // 3
    return jnp.max(out[:, :, : Lp * 3].reshape(N, C, Lp, 3), axis=-1)


if __name__ == "__main__":
    key = jax.random.PRNGKey(0)

    def make_params(k, c_in, c_out):
        ks = jax.random.split(k, 10)
        p = {
            "w1": 0.1 * jax.random.normal(ks[0], (c_out, c_in, 3), jnp.float32),
            "b1": 0.1 * jax.random.normal(ks[1], (c_out,), jnp.float32),
            "w2": 0.1 * jax.random.normal(ks[2], (c_out, c_out, 3), jnp.float32),
            "b2": 0.1 * jax.random.normal(ks[3], (c_out,), jnp.float32),
            "bn_gamma": 1.0 + 0.1 * jax.random.normal(ks[4], (c_out,), jnp.float32),
            "bn_beta": 0.1 * jax.random.normal(ks[5], (c_out,), jnp.float32),
            "bn_mean": 0.1 * jax.random.normal(ks[6], (c_out,), jnp.float32),
            "bn_var": 0.5 + jnp.abs(jax.random.normal(ks[7], (c_out,), jnp.float32)),
        }
        if c_in != c_out:
            p["wd"] = 0.1 * jax.random.normal(ks[8], (c_out, c_in, 1), jnp.float32)
            p["bd"] = 0.1 * jax.random.normal(ks[9], (c_out,), jnp.float32)
        return p

    # Tolerance budget covers a worst-case single-pass-bf16 MXU default; the kernel
    # typically agrees with the f32 reference to ~1e-5.
    TOL = 1e-2

    # Case 1: channel expansion (conv_downsample folded into conv2), L tiled into
    # 2 halo'd blocks, L % 3 == 1.
    k1, k2, k3, k4, k5, k6 = jax.random.split(key, 6)
    N, C_in, C_out, L = 2, 4, 8, 751
    x = jax.random.normal(k1, (N, C_in, L), jnp.float32)
    params = make_params(k2, C_in, C_out)
    out = residual_block(x, params, block_lp=128)
    jax.block_until_ready(out)
    ref = _reference(x, params)
    assert out.shape == (N, C_out, L // 3), out.shape
    err = float(jnp.max(jnp.abs(out - ref)))
    assert jnp.allclose(out, ref, atol=TOL, rtol=TOL), f"max abs err {err}"

    # Case 2: identity shortcut (C_in == C_out), single tile, L % 3 == 0.
    N2, C2, L2 = 2, 8, 96
    x2 = jax.random.normal(k3, (N2, C2, L2), jnp.float32)
    params2 = make_params(k4, C2, C2)
    out2 = residual_block(x2, params2)
    jax.block_until_ready(out2)
    ref2 = _reference(x2, params2)
    assert out2.shape == (N2, C2, L2 // 3), out2.shape
    err2 = float(jnp.max(jnp.abs(out2 - ref2)))
    assert jnp.allclose(out2, ref2, atol=TOL, rtol=TOL), f"max abs err {err2}"

    # Case 3: identity shortcut, 3 tiles (partial last tile), L % 3 == 2.
    N3, C3, L3 = 1, 8, 899
    x3 = jax.random.normal(k5, (N3, C3, L3), jnp.float32)
    params3 = make_params(k6, C3, C3)
    out3 = residual_block(x3, params3, block_lp=128)
    jax.block_until_ready(out3)
    ref3 = _reference(x3, params3)
    assert out3.shape == (N3, C3, L3 // 3), out3.shape
    err3 = float(jnp.max(jnp.abs(out3 - ref3)))
    assert jnp.allclose(out3, ref3, atol=TOL, rtol=TOL), f"max abs err {err3}"

    print("KERNEL_OK")
</pallas_src>

<mosaic_0001>
module attributes {stable_mosaic.version = 11 : i64} {
  func.func @_res_block_kernel(%arg0: i32, %arg1: i32, %arg2: memref<1x1x12x132xf32, #tpu.memory_space<vmem>>, %arg3: memref<8x12xf32, #tpu.memory_space<vmem>>, %arg4: memref<8x1xf32, #tpu.memory_space<vmem>>, %arg5: memref<8x28xf32, #tpu.memory_space<vmem>>, %arg6: memref<8x1xf32, #tpu.memory_space<vmem>>, %arg7: memref<1x8x128xf32, #tpu.memory_space<vmem>>) attributes {dimension_semantics = [#tpu.dimension_semantics<parallel>, #tpu.dimension_semantics<parallel>], iteration_bounds = array<i64: 2, 2>, scalar_prefetch = 0 : i64, scratch_operands = 0 : i64, tpu.core_type = #tpu.core_type<tc>, window_params = [{transform_indices = @transform_0, window_bounds = array<i64: 1, 1, 12, 132>}, {pipeline_mode = #tpu.pipeline_mode<synchronous>, transform_indices = @transform_1, window_bounds = array<i64: 8, 12>}, {pipeline_mode = #tpu.pipeline_mode<synchronous>, transform_indices = @transform_2, window_bounds = array<i64: 8, 1>}, {pipeline_mode = #tpu.pipeline_mode<synchronous>, transform_indices = @transform_3, window_bounds = array<i64: 8, 28>}, {pipeline_mode = #tpu.pipeline_mode<synchronous>, transform_indices = @transform_4, window_bounds = array<i64: 8, 1>}, {transform_indices = @transform_5, window_bounds = array<i64: 1, 8, 128>}]} {
    %c3_i32 = arith.constant 3 : i32
    %0 = arith.muli %c3_i32, %arg1 : i32
    %c128_i32 = arith.constant 128 : i32
    %1 = arith.muli %0, %c128_i32 : i32
    %c0 = arith.constant 0 : index
    %c0_0 = arith.constant 0 : index
    %c0_1 = arith.constant 0 : index
    %c0_2 = arith.constant 0 : index
    %2 = vector.load %arg2[%c0, %c0_0, %c0_1, %c0_2] : memref<1x1x12x132xf32, #tpu.memory_space<vmem>>, vector<1x1x12x132xf32>
    %3 = vector.shape_cast %2 : vector<1x1x12x132xf32> to vector<12x132xf32>
    %4 = vector.extract_strided_slice %3 {offsets = [0, 0], sizes = [4, 132], strides = [1, 1]} : vector<12x132xf32> to vector<4x132xf32>
    %5 = vector.extract_strided_slice %3 {offsets = [4, 0], sizes = [4, 132], strides = [1, 1]} : vector<12x132xf32> to vector<4x132xf32>
    %6 = vector.extract_strided_slice %3 {offsets = [8, 0], sizes = [4, 132], strides = [1, 1]} : vector<12x132xf32> to vector<4x132xf32>
    %c0_3 = arith.constant 0 : index
    %c0_4 = arith.constant 0 : index
    %7 = vector.load %arg3[%c0_3, %c0_4] : memref<8x12xf32, #tpu.memory_space<vmem>>, vector<8x12xf32>
    %c0_5 = arith.constant 0 : index
    %c0_6 = arith.constant 0 : index
    %8 = vector.load %arg4[%c0_5, %c0_6] : memref<8x1xf32, #tpu.memory_space<vmem>>, vector<8x1xf32>
    %c0_7 = arith.constant 0 : index
    %c0_8 = arith.constant 0 : index
    %9 = vector.load %arg5[%c0_7, %c0_8] : memref<8x28xf32, #tpu.memory_space<vmem>>, vector<8x28xf32>
    %c0_9 = arith.constant 0 : index
    %c0_10 = arith.constant 0 : index
    %10 = vector.load %arg6[%c0_9, %c0_10] : memref<8x1xf32, #tpu.memory_space<vmem>>, vector<8x1xf32>
    %11 = tpu.iota {dimensions = array<i32: 1>} : vector<1x130xi32>
    %12 = vector.extract_strided_slice %6 {offsets = [0, 0], sizes = [4, 130], strides = [1, 1]} : vector<4x132xf32> to vector<4x130xf32>
    %13 = vector.extract_strided_slice %4 {offsets = [0, 1], sizes = [4, 130], strides = [1, 1]} : vector<4x132xf32> to vector<4x130xf32>
    %14 = vector.extract_strided_slice %5 {offsets = [0, 1], sizes = [4, 130], strides = [1, 1]} : vector<4x132xf32> to vector<4x130xf32>
    %15 = tpu.concatenate %12, %13, %14 in 0 : vector<4x130xf32>, vector<4x130xf32>, vector<4x130xf32> -> vector<12x130xf32>
    %16 = vector.extract_strided_slice %4 {offsets = [0, 1], sizes = [4, 130], strides = [1, 1]} : vector<4x132xf32> to vector<4x130xf32>
    %17 = vector.extract_strided_slice %5 {offsets = [0, 1], sizes = [4, 130], strides = [1, 1]} : vector<4x132xf32> to vector<4x130xf32>
    %18 = vector.extract_strided_slice %6 {offsets = [0, 1], sizes = [4, 130], strides = [1, 1]} : vector<4x132xf32> to vector<4x130xf32>
    %19 = tpu.concatenate %16, %17, %18 in 0 : vector<4x130xf32>, vector<4x130xf32>, vector<4x130xf32> -> vector<12x130xf32>
    %20 = vector.extract_strided_slice %5 {offsets = [0, 1], sizes = [4, 130], strides = [1, 1]} : vector<4x132xf32> to vector<4x130xf32>
    %21 = vector.extract_strided_slice %6 {offsets = [0, 1], sizes = [4, 130], strides = [1, 1]} : vector<4x132xf32> to vector<4x130xf32>
    %22 = vector.extract_strided_slice %4 {offsets = [0, 2], sizes = [4, 130], strides = [1, 1]} : vector<4x132xf32> to vector<4x130xf32>
    %23 = tpu.concatenate %20, %21, %22 in 0 : vector<4x130xf32>, vector<4x130xf32>, vector<4x130xf32> -> vector<12x130xf32>
    %cst = arith.constant dense<0.000000e+00> : vector<8x130xf32>
    %24 = tpu.matmul %7, %15, %cst {dimension_numbers = #tpu.dot_dimension_numbers<[1], [0], [0], [1], [0, 0, 1, 1], [], []>} : vector<8x12xf32>, vector<12x130xf32>, vector<8x130xf32> -> vector<8x130xf32>
    %25 = vector.broadcast %8 : vector<8x1xf32> to vector<8x130xf32>
    %26 = arith.addf %24, %25 : vector<8x130xf32>
    %cst_11 = arith.constant 0.000000e+00 : f32
    %27 = vector.broadcast %cst_11 : f32 to vector<8x130xf32>
    %28 = arith.cmpf oge, %26, %27 : vector<8x130xf32>
    %cst_12 = arith.constant 3.000000e-01 : f32
    %29 = vector.broadcast %cst_12 : f32 to vector<8x130xf32>
    %30 = arith.mulf %29, %26 : vector<8x130xf32>
    %31 = arith.select %28, %26, %30 : vector<8x130xi1>, vector<8x130xf32>
    %c3_i32_13 = arith.constant 3 : i32
    %32 = arith.subi %1, %c3_i32_13 : i32
    %c0_i32 = arith.constant 0 : i32
    %33 = arith.addi %32, %c0_i32 : i32
    %c3_i32_14 = arith.constant 3 : i32
    %34 = vector.broadcast %c3_i32_14 : i32 to vector<1x130xi32>
    %35 = arith.muli %34, %11 : vector<1x130xi32>
    %36 = vector.broadcast %33 : i32 to vector<1x130xi32>
    %37 = arith.addi %36, %35 : vector<1x130xi32>
    %c0_i32_15 = arith.constant 0 : i32
    %38 = vector.broadcast %c0_i32_15 : i32 to vector<1x130xi32>
    %39 = arith.cmpi sge, %37, %38 : vector<1x130xi32>
    %c751_i32 = arith.constant 751 : i32
    %40 = vector.broadcast %c751_i32 : i32 to vector<1x130xi32>
    %41 = arith.cmpi slt, %37, %40 : vector<1x130xi32>
    %42 = arith.andi %39, %41 : vector<1x130xi1>
    %43 = arith.extui %42 : vector<1x130xi1> to vector<1x130xi32>
    %44 = arith.sitofp %43 : vector<1x130xi32> to vector<1x130xf32>
    %45 = vector.broadcast %44 : vector<1x130xf32> to vector<8x130xf32>
    %46 = arith.mulf %31, %45 : vector<8x130xf32>
    %cst_16 = arith.constant dense<0.000000e+00> : vector<8x130xf32>
    %47 = tpu.matmul %7, %19, %cst_16 {dimension_numbers = #tpu.dot_dimension_numbers<[1], [0], [0], [1], [0, 0, 1, 1], [], []>} : vector<8x12xf32>, vector<12x130xf32>, vector<8x130xf32> -> vector<8x130xf32>
    %48 = vector.broadcast %8 : vector<8x1xf32> to vector<8x130xf32>
    %49 = arith.addf %47, %48 : vector<8x130xf32>
    %cst_17 = arith.constant 0.000000e+00 : f32
    %50 = vector.broadcast %cst_17 : f32 to vector<8x130xf32>
    %51 = arith.cmpf oge, %49, %50 : vector<8x130xf32>
    %cst_18 = arith.constant 3.000000e-01 : f32
    %52 = vector.broadcast %cst_18 : f32 to vector<8x130xf32>
    %53 = arith.mulf %52, %49 : vector<8x130xf32>
    %54 = arith.select %51, %49, %53 : vector<8x130xi1>, vector<8x130xf32>
    %c3_i32_19 = arith.constant 3 : i32
    %55 = arith.subi %1, %c3_i32_19 : i32
    %c1_i32 = arith.constant 1 : i32
    %56 = arith.addi %55, %c1_i32 : i32
    %c3_i32_20 = arith.constant 3 : i32
    %57 = vector.broadcast %c3_i32_20 : i32 to vector<1x130xi32>
    %58 = arith.muli %57, %11 : vector<1x130xi32>
    %59 = vector.broadcast %56 : i32 to vector<1x130xi32>
    %60 = arith.addi %59, %58 : vector<1x130xi32>
    %c0_i32_21 = arith.constant 0 : i32
    %61 = vector.broadcast %c0_i32_21 : i32 to vector<1x130xi32>
    %62 = arith.cmpi sge, %60, %61 : vector<1x130xi32>
    %c751_i32_22 = arith.constant 751 : i32
    %63 = vector.broadcast %c751_i32_22 : i32 to vector<1x130xi32>
    %64 = arith.cmpi slt, %60, %63 : vector<1x130xi32>
    %65 = arith.andi %62, %64 : vector<1x130xi1>
    %66 = arith.extui %65 : vector<1x130xi1> to vector<1x130xi32>
    %67 = arith.sitofp %66 : vector<1x130xi32> to vector<1x130xf32>
    %68 = vector.broadcast %67 : vector<1x130xf32> to vector<8x130xf32>
    %69 = arith.mulf %54, %68 : vector<8x130xf32>
    %cst_23 = arith.constant dense<0.000000e+00> : vector<8x130xf32>
    %70 = tpu.matmul %7, %23, %cst_23 {dimension_numbers = #tpu.dot_dimension_numbers<[1], [0], [0], [1], [0, 0, 1, 1], [], []>} : vector<8x12xf32>, vector<12x130xf32>, vector<8x130xf32> -> vector<8x130xf32>
    %71 = vector.broadcast %8 : vector<8x1xf32> to vector<8x130xf32>
    %72 = arith.addf %70, %71 : vector<8x130xf32>
    %cst_24 = arith.constant 0.000000e+00 : f32
    %73 = vector.broadcast %cst_24 : f32 to vector<8x130xf32>
    %74 = arith.cmpf oge, %72, %73 : vector<8x130xf32>
    %cst_25 = arith.constant 3.000000e-01 : f32
    %75 = vector.broadcast %cst_25 : f32 to vector<8x130xf32>
    %76 = arith.mulf %75, %72 : vector<8x130xf32>
    %77 = arith.select %74, %72, %76 : vector<8x130xi1>, vector<8x130xf32>
    %c3_i32_26 = arith.constant 3 : i32
    %78 = arith.subi %1, %c3_i32_26 : i32
    %c2_i32 = arith.constant 2 : i32
    %79 = arith.addi %78, %c2_i32 : i32
    %c3_i32_27 = arith.constant 3 : i32
    %80 = vector.broadcast %c3_i32_27 : i32 to vector<1x130xi32>
    %81 = arith.muli %80, %11 : vector<1x130xi32>
    %82 = vector.broadcast %79 : i32 to vector<1x130xi32>
    %83 = arith.addi %82, %81 : vector<1x130xi32>
    %c0_i32_28 = arith.constant 0 : i32
    %84 = vector.broadcast %c0_i32_28 : i32 to vector<1x130xi32>
    %85 = arith.cmpi sge, %83, %84 : vector<1x130xi32>
    %c751_i32_29 = arith.constant 751 : i32
    %86 = vector.broadcast %c751_i32_29 : i32 to vector<1x130xi32>
    %87 = arith.cmpi slt, %83, %86 : vector<1x130xi32>
    %88 = arith.andi %85, %87 : vector<1x130xi1>
    %89 = arith.extui %88 : vector<1x130xi1> to vector<1x130xi32>
    %90 = arith.sitofp %89 : vector<1x130xi32> to vector<1x130xf32>
    %91 = vector.broadcast %90 : vector<1x130xf32> to vector<8x130xf32>
    %92 = arith.mulf %77, %91 : vector<8x130xf32>
    %93 = vector.extract_strided_slice %4 {offsets = [0, 2], sizes = [4, 128], strides = [1, 1]} : vector<4x132xf32> to vector<4x128xf32>
    %94 = vector.extract_strided_slice %5 {offsets = [0, 2], sizes = [4, 128], strides = [1, 1]} : vector<4x132xf32> to vector<4x128xf32>
    %95 = vector.extract_strided_slice %6 {offsets = [0, 2], sizes = [4, 128], strides = [1, 1]} : vector<4x132xf32> to vector<4x128xf32>
    %96 = vector.extract_strided_slice %92 {offsets = [0, 0], sizes = [8, 128], strides = [1, 1]} : vector<8x130xf32> to vector<8x128xf32>
    %97 = vector.extract_strided_slice %46 {offsets = [0, 1], sizes = [8, 128], strides = [1, 1]} : vector<8x130xf32> to vector<8x128xf32>
    %98 = vector.extract_strided_slice %69 {offsets = [0, 1], sizes = [8, 128], strides = [1, 1]} : vector<8x130xf32> to vector<8x128xf32>
    %99 = tpu.concatenate %96, %97, %98 in 0 : vector<8x128xf32>, vector<8x128xf32>, vector<8x128xf32> -> vector<24x128xf32>
    %100 = vector.extract_strided_slice %46 {offsets = [0, 1], sizes = [8, 128], strides = [1, 1]} : vector<8x130xf32> to vector<8x128xf32>
    %101 = vector.extract_strided_slice %69 {offsets = [0, 1], sizes = [8, 128], strides = [1, 1]} : vector<8x130xf32> to vector<8x128xf32>
    %102 = vector.extract_strided_slice %92 {offsets = [0, 1], sizes = [8, 128], strides = [1, 1]} : vector<8x130xf32> to vector<8x128xf32>
    %103 = tpu.concatenate %100, %101, %102 in 0 : vector<8x128xf32>, vector<8x128xf32>, vector<8x128xf32> -> vector<24x128xf32>
    %104 = vector.extract_strided_slice %69 {offsets = [0, 1], sizes = [8, 128], strides = [1, 1]} : vector<8x130xf32> to vector<8x128xf32>
    %105 = vector.extract_strided_slice %92 {offsets = [0, 1], sizes = [8, 128], strides = [1, 1]} : vector<8x130xf32> to vector<8x128xf32>
    %106 = vector.extract_strided_slice %46 {offsets = [0, 2], sizes = [8, 128], strides = [1, 1]} : vector<8x130xf32> to vector<8x128xf32>
    %107 = tpu.concatenate %104, %105, %106 in 0 : vector<8x128xf32>, vector<8x128xf32>, vector<8x128xf32> -> vector<24x128xf32>
    %108 = tpu.concatenate %99, %93 in 0 : vector<24x128xf32>, vector<4x128xf32> -> vector<28x128xf32>
    %cst_30 = arith.constant dense<0.000000e+00> : vector<8x128xf32>
    %109 = tpu.matmul %9, %108, %cst_30 {dimension_numbers = #tpu.dot_dimension_numbers<[1], [0], [0], [1], [0, 0, 1, 1], [], []>} : vector<8x28xf32>, vector<28x128xf32>, vector<8x128xf32> -> vector<8x128xf32>
    %110 = vector.broadcast %10 : vector<8x1xf32> to vector<8x128xf32>
    %111 = arith.addf %109, %110 : vector<8x128xf32>
    %112 = tpu.concatenate %103, %94 in 0 : vector<24x128xf32>, vector<4x128xf32> -> vector<28x128xf32>
    %cst_31 = arith.constant dense<0.000000e+00> : vector<8x128xf32>
    %113 = tpu.matmul %9, %112, %cst_31 {dimension_numbers = #tpu.dot_dimension_numbers<[1], [0], [0], [1], [0, 0, 1, 1], [], []>} : vector<8x28xf32>, vector<28x128xf32>, vector<8x128xf32> -> vector<8x128xf32>
    %114 = vector.broadcast %10 : vector<8x1xf32> to vector<8x128xf32>
    %115 = arith.addf %113, %114 : vector<8x128xf32>
    %116 = tpu.concatenate %107, %95 in 0 : vector<24x128xf32>, vector<4x128xf32> -> vector<28x128xf32>
    %cst_32 = arith.constant dense<0.000000e+00> : vector<8x128xf32>
    %117 = tpu.matmul %9, %116, %cst_32 {dimension_numbers = #tpu.dot_dimension_numbers<[1], [0], [0], [1], [0, 0, 1, 1], [], []>} : vector<8x28xf32>, vector<28x128xf32>, vector<8x128xf32> -> vector<8x128xf32>
    %118 = vector.broadcast %10 : vector<8x1xf32> to vector<8x128xf32>
    %119 = arith.addf %117, %118 : vector<8x128xf32>
    %120 = arith.maximumf %111, %115 : vector<8x128xf32>
    %121 = arith.maximumf %120, %119 : vector<8x128xf32>
    %c0_33 = arith.constant 0 : index
    %c0_34 = arith.constant 0 : index
    %c0_35 = arith.constant 0 : index
    %122 = vector.load %arg7[%c0_33, %c0_34, %c0_35] : memref<1x8x128xf32, #tpu.memory_space<vmem>>, vector<1x8x128xf32>
    %123 = vector.shape_cast %122 : vector<1x8x128xf32> to vector<8x128xf32>
    %124 = vector.shape_cast %121 : vector<8x128xf32> to vector<1x8x128xf32>
    tpu.vector_store %arg7[%c0_33, %c0_34, %c0_35], %124 {strides = array<i32>} : memref<1x8x128xf32, #tpu.memory_space<vmem>>, vector<1x8x128xf32>,
    return
  }
  func.func @transform_0(%arg0: i32, %arg1: i32) -> (i32, i32, i32, i32) {
    %c0_i32 = arith.constant 0 : i32
    %c0_i32_0 = arith.constant 0 : i32
    %c0_i32_1 = arith.constant 0 : i32
    return %arg0, %arg1, %c0_i32, %c0_i32_0 : i32, i32, i32, i32
  }
  func.func @transform_1(%arg0: i32, %arg1: i32) -> (i32, i32) {
    %c0_i32 = arith.constant 0 : i32
    %c0_i32_0 = arith.constant 0 : i32
    %c0_i32_1 = arith.constant 0 : i32
    return %c0_i32, %c0_i32_0 : i32, i32
  }
  func.func @transform_2(%arg0: i32, %arg1: i32) -> (i32, i32) {
    %c0_i32 = arith.constant 0 : i32
    %c0_i32_0 = arith.constant 0 : i32
    %c0_i32_1 = arith.constant 0 : i32
    return %c0_i32, %c0_i32_0 : i32, i32
  }
  func.func @transform_3(%arg0: i32, %arg1: i32) -> (i32, i32) {
    %c0_i32 = arith.constant 0 : i32
    %c0_i32_0 = arith.constant 0 : i32
    %c0_i32_1 = arith.constant 0 : i32
    return %c0_i32, %c0_i32_0 : i32, i32
  }
  func.func @transform_4(%arg0: i32, %arg1: i32) -> (i32, i32) {
    %c0_i32 = arith.constant 0 : i32
    %c0_i32_0 = arith.constant 0 : i32
    %c0_i32_1 = arith.constant 0 : i32
    return %c0_i32, %c0_i32_0 : i32, i32
  }
  func.func @transform_5(%arg0: i32, %arg1: i32) -> (i32, i32, i32) {
    %c0_i32 = arith.constant 0 : i32
    %c0_i32_0 = arith.constant 0 : i32
    return %arg0, %c0_i32, %arg1 : i32, i32, i32
  }
}

</mosaic_0001>

<llo_original>
// kernel: tpu_custom_call.1
$region0: #{tpu_custom_call.1}
  #allocation0 [shape = 'u32[]', space=smem, size = 0x4, offset = 0x4, fixed_abs, tag = 'smem constant byte address 0x4 - core index']
  #allocation1 [shape = 'u32[144,128]{1,0:T(1,128)}', space=vmem, size = 0x12000, scoped, tag = 'internal scratch']
  %s0 = inlined_call_operand.vmem [shape: f32[2,2,12,132], index: 0, kind: input, shape index: {}]
  %s1 = inlined_call_operand.vmem [shape: f32[8,12], index: 1, kind: input, shape index: {}]
  %s2 = inlined_call_operand.vmem [shape: f32[8,1], index: 2, kind: input, shape index: {}]
  %s3 = inlined_call_operand.vmem [shape: f32[8,28], index: 3, kind: input, shape index: {}]
  %s4 = inlined_call_operand.vmem [shape: f32[8,1], index: 4, kind: input, shape index: {}]
  %s5 = inlined_call_operand.hbm [shape: f32[2,8,256], index: 5, kind: output, shape index: {}]
  %s6 = sld [smem:[#allocation0]]
  $region53: #{tpu_custom_call.1} parent=0
    _
  %s8 = ssub.s32 1, %s6
  %s9 = scalar_select 0, %s8, %s6
  $region1: #{tpu_custom_call.1} parent=0
    #allocation2 [shape = 'u8[8192]{0}', space=vmem, size = 0x2000, scoped, tag = 'output window, operand 0']
    #allocation3 [shape = 's32[2]{0}', space=sflag, size = 0x8, scoped, tag = 'scoped memory for tpu_custom_call.1']
    %10 = vsyncpa [#allocation3], 0
    %s11 = scalar_lea.sflag [#allocation3], 1
    %12 = vsyncpa %s11, 0
    loop: start=0, step=1, limit=6
    $region2: #{tpu_custom_call.1} parent=1 // loop_pre_header
      _
    $region3: #{tpu_custom_call.1} parent=1 // loop_header
      %s14 = sphi 0, %s18
      %p15 = scmp.ge.s32.totalorder %s14, 6
      %s21 = sphi 0, %s33
      %s22 = sphi 0, %s29
      %s23 = sphi 0, %s21
      %s24 = sphi 0, %s22
      %s25 = sphi 0, %s23
      %s26 = sphi 0, %s24
      %s38 = sphi 0, %s40
      %s41 = sphi 0, %s38
      %s42 = sphi 0, %s41
      %s58 = sphi 0, %s42
      %s62 = sphi 0, %s62
      %s64 = sphi 0, %s62
      %s65 = sphi 0, %s64
      %s79 = sphi 0, %s65
      %s83 = sphi 0, %s83
      %s85 = sphi 0, %s83
      %s86 = sphi 0, %s85
      %s100 = sphi 0, %s86
      %s104 = sphi 0, %s104
      %s106 = sphi 0, %s104
      %s107 = sphi 0, %s106
      %s121 = sphi 0, %s107
      %s125 = sphi 0, %s125
      %s127 = sphi 0, %s125
      %s128 = sphi 0, %s127
      %s142 = sphi 0, %s128
      %s150 = sphi 0, %s152
      %s153 = sphi 0, %s150
      %s154 = sphi 0, %s153
      %s170 = sphi 0, %s154
    $region4: #{tpu_custom_call.1} parent=1 // loop_header_branch
      %17 = sbr.rel (%p15) target = $region8
    $region5: #{tpu_custom_call.1} parent=1 // loop_body
      %s19 = ssub.s32 %s14, 1
      %s20 = ssub.s32 %s14, 2
      %s27 = sadd.s32 1, %s22
      %p28 = scmp.ge.s32.totalorder %s27, 2
      %s29 = scalar_select %p28, 0, %s27
      %s30 = sadd.s32 1, %s21
      %s31 = scalar_select %p28, %s30, %s21
      %p32 = scmp.ge.s32.totalorder %s31, 2
      %s33 = scalar_select %p32, 0, %s31
      %s34 = ssub.s32 %s21, %s33
      %s35 = ssub.s32 %s22, %s29
      %s36 = sor.u32 %s34, %s35
      %p37 = scmp.eq.s32.totalorder %s36, 0
      %s39 = sadd.s32 %s38, 1
      %s40 = scalar_select %p37, %s38, %s39
      %p43 = pneg %p37
      %p44 = scmp.eq.s32.totalorder %s14, 3
      %p45 = por %p43, %p44
      %p46 = scmp.ne.s32.totalorder %s38, %s41
      %p47 = scmp.eq.s32.totalorder %s14, 0
      %p48 = por %p46, %p47
      %p49 = scmp.ne.s32.totalorder %s38, %s41
      %p50 = scmp.eq.s32.totalorder %s19, 3
      %p51 = por %p49, %p50
      %p52 = scmp.ne.s32.totalorder %s41, %s42
      %p53 = scmp.eq.s32.totalorder %s19, 0
      %p54 = por %p52, %p53
      %p55 = scmp.ne.s32.totalorder %s41, %s42
      %p56 = scmp.eq.s32.totalorder %s20, 3
      %p57 = por %p55, %p56
      %p59 = scmp.ne.s32.totalorder %s42, %s58
      %p60 = scmp.eq.s32.totalorder %s20, 0
      %p61 = por %p59, %p60
      %s63 = sadd.s32 %s62, 1
      %p66 = scmp.eq.s32.totalorder %s14, 3
      %p67 = scmp.ne.s32.totalorder %s62, %s64
      %p68 = scmp.eq.s32.totalorder %s14, 0
      %p69 = por %p67, %p68
      %p70 = scmp.ne.s32.totalorder %s62, %s64
      %p71 = scmp.eq.s32.totalorder %s19, 3
      %p72 = por %p70, %p71
      %p73 = scmp.ne.s32.totalorder %s64, %s65
      %p74 = scmp.eq.s32.totalorder %s19, 0
      %p75 = por %p73, %p74
      %p76 = scmp.ne.s32.totalorder %s64, %s65
      %p77 = scmp.eq.s32.totalorder %s20, 3
      %p78 = por %p76, %p77
      %p80 = scmp.ne.s32.totalorder %s65, %s79
      %p81 = scmp.eq.s32.totalorder %s20, 0
      %p82 = por %p80, %p81
      %s84 = sadd.s32 %s83, 1
      %p87 = scmp.eq.s32.totalorder %s14, 3
      %p88 = scmp.ne.s32.totalorder %s83, %s85
      %p89 = scmp.eq.s32.totalorder %s14, 0
      %p90 = por %p88, %p89
      %p91 = scmp.ne.s32.totalorder %s83, %s85
      %p92 = scmp.eq.s32.totalorder %s19, 3
      %p93 = por %p91, %p92
      %p94 = scmp.ne.s32.totalorder %s85, %s86
      %p95 = scmp.eq.s32.totalorder %s19, 0
      %p96 = por %p94, %p95
      %p97 = scmp.ne.s32.totalorder %s85, %s86
      %p98 = scmp.eq.s32.totalorder %s20, 3
      %p99 = por %p97, %p98
      %p101 = scmp.ne.s32.totalorder %s86, %s100
      %p102 = scmp.eq.s32.totalorder %s20, 0
      %p103 = por %p101, %p102
      %s105 = sadd.s32 %s104, 1
      %p108 = scmp.eq.s32.totalorder %s14, 3
      %p109 = scmp.ne.s32.totalorder %s104, %s106
      %p110 = scmp.eq.s32.totalorder %s14, 0
      %p111 = por %p109, %p110
      %p112 = scmp.ne.s32.totalorder %s104, %s106
      %p113 = scmp.eq.s32.totalorder %s19, 3
      %p114 = por %p112, %p113
      %p115 = scmp.ne.s32.totalorder %s106, %s107
      %p116 = scmp.eq.s32.totalorder %s19, 0
      %p117 = por %p115, %p116
      %p118 = scmp.ne.s32.totalorder %s106, %s107
      %p119 = scmp.eq.s32.totalorder %s20, 3
      %p120 = por %p118, %p119
      %p122 = scmp.ne.s32.totalorder %s107, %s121
      %p123 = scmp.eq.s32.totalorder %s20, 0
      %p124 = por %p122, %p123
      %s126 = sadd.s32 %s125, 1
      %p129 = scmp.eq.s32.totalorder %s14, 3
      %p130 = scmp.ne.s32.totalorder %s125, %s127
      %p131 = scmp.eq.s32.totalorder %s14, 0
      %p132 = por %p130, %p131
      %p133 = scmp.ne.s32.totalorder %s125, %s127
      %p134 = scmp.eq.s32.totalorder %s19, 3
      %p135 = por %p133, %p134
      %p136 = scmp.ne.s32.totalorder %s127, %s128
      %p137 = scmp.eq.s32.totalorder %s19, 0
      %p138 = por %p136, %p137
      %p139 = scmp.ne.s32.totalorder %s127, %s128
      %p140 = scmp.eq.s32.totalorder %s20, 3
      %p141 = por %p139, %p140
      %p143 = scmp.ne.s32.totalorder %s128, %s142
      %p144 = scmp.eq.s32.totalorder %s20, 0
      %p145 = por %p143, %p144
      %s146 = ssub.s32 %s21, %s33
      %s147 = ssub.s32 %s22, %s29
      %s148 = sor.u32 %s146, %s147
      %p149 = scmp.eq.s32.totalorder %s148, 0
      %s151 = sadd.s32 %s150, 1
      %s152 = scalar_select %p149, %s150, %s151
      %p155 = pneg %p149
      %p156 = scmp.eq.s32.totalorder %s14, 3
      %p157 = por %p155, %p156
      %p158 = scmp.ne.s32.totalorder %s150, %s153
      %p159 = scmp.eq.s32.totalorder %s14, 0
      %p160 = por %p158, %p159
      %p161 = scmp.ne.s32.totalorder %s150, %s153
      %p162 = scmp.eq.s32.totalorder %s19, 3
      %p163 = por %p161, %p162
      %p164 = scmp.ne.s32.totalorder %s153, %s154
      %p165 = scmp.eq.s32.totalorder %s19, 0
      %p166 = por %p164, %p165
      %p167 = scmp.ne.s32.totalorder %s153, %s154
      %p168 = scmp.eq.s32.totalorder %s20, 3
      %p169 = por %p167, %p168
      %p171 = scmp.ne.s32.totalorder %s154, %s170
      %p172 = scmp.eq.s32.totalorder %s20, 0
      %p173 = por %p171, %p172
      %p174 = scmp.le.s32.totalorder 1, %s14
      %p175 = scmp.lt.s32.totalorder %s14, 5
      %p176 = pnand %p174, %p175
      %p177 = pneg %p176
      // Predicated region
      $region9: #{tpu_custom_call.1} parent=5 // pred_check
        _
      $region10: #{tpu_custom_call.1} parent=5 // pred_check_branch
        %179 = sbr.rel (%p176) target = $region12
      $region11: #{tpu_custom_call.1} parent=5 // pred_region
        %s180 = ssub.s32 %s14, 1
        // Predicated region
        $region13: #{tpu_custom_call.1} parent=11 // pred_check
          %p181 = pneg %p75
        $region14: #{tpu_custom_call.1} parent=11 // pred_check_branch
          %183 = sbr.rel (%p181) target = $region16
        $region15: #{tpu_custom_call.1} parent=11 // pred_region
          _
        $region16: #{tpu_custom_call.1} parent=11 // pred_fallthru
          _
        // Predicated region
        $region17: #{tpu_custom_call.1} parent=11 // pred_check
          %p184 = pneg %p96
        $region18: #{tpu_custom_call.1} parent=11 // pred_check_branch
          %186 = sbr.rel (%p184) target = $region20
        $region19: #{tpu_custom_call.1} parent=11 // pred_region
          _
        $region20: #{tpu_custom_call.1} parent=11 // pred_fallthru
          _
        // Predicated region
        $region21: #{tpu_custom_call.1} parent=11 // pred_check
          %p187 = pneg %p117
        $region22: #{tpu_custom_call.1} parent=11 // pred_check_branch
          %189 = sbr.rel (%p187) target = $region24
        $region23: #{tpu_custom_call.1} parent=11 // pred_region
          _
        $region24: #{tpu_custom_call.1} parent=11 // pred_fallthru
          _
        // Predicated region
        $region25: #{tpu_custom_call.1} parent=11 // pred_check
          %p190 = pneg %p138
        $region26: #{tpu_custom_call.1} parent=11 // pred_check_branch
          %192 = sbr.rel (%p190) target = $region28
        $region27: #{tpu_custom_call.1} parent=11 // pred_region
          _
        $region28: #{tpu_custom_call.1} parent=11 // pred_fallthru
          _
      $region12: #{tpu_custom_call.1} parent=5 // pred_fallthru
        _
      %p193 = scmp.lt.s32.totalorder %s14, 4
      // Predicated region
      $region29: #{tpu_custom_call.1} parent=5 // pred_check
        %p194 = pneg %p193
      $region30: #{tpu_custom_call.1} parent=5 // pred_check_branch
        %196 = sbr.rel (%p194) target = $region32
      $region31: #{tpu_custom_call.1} parent=5 // pred_region
        // Predicated region
        $region33: #{tpu_custom_call.1} parent=31 // pred_check
          %p197 = pneg %p48
        $region34: #{tpu_custom_call.1} parent=31 // pred_check_branch
          %199 = sbr.rel (%p197) target = $region36
        $region35: #{tpu_custom_call.1} parent=31 // pred_region
          %p200 = scmp.lt.s32.totalorder %s21, 1
          %s201 = scalar_select %p200, %s21, 1
          %p202 = scmp.lt.s32.totalorder %s22, 1
          %s203 = scalar_select %p202, %s22, 1
          %s204 = smul.addr %s203, 4
          %s205 = smul.addr %s201, 8
          %s206 = sadd.s32 %s204, %s205
          %s207 = smul.addr %s206, 8
          %s208 = scalar_lea.vmem %s0, %s207
        $region36: #{tpu_custom_call.1} parent=31 // pred_fallthru
          _
      $region32: #{tpu_custom_call.1} parent=5 // pred_fallthru
        _
      %p209 = scmp.le.s32.totalorder 1, %s14
      %p210 = scmp.lt.s32.totalorder %s14, 5
      %p211 = pnand %p209, %p210
      %p212 = pneg %p211
      // Predicated region
      $region37: #{tpu_custom_call.1} parent=5 // pred_check
        _
      $region38: #{tpu_custom_call.1} parent=5 // pred_check_branch
        %214 = sbr.rel (%p211) target = $region40
      $region39: #{tpu_custom_call.1} parent=5 // pred_region
        %s215 = ssub.s32 %s14, 1
        %p216 = scmp.lt.s32.totalorder %s23, 1
        %s217 = scalar_select %p216, %s23, 1
        %p218 = scmp.lt.s32.totalorder %s24, 1
        %s219 = scalar_select %p218, %s24, 1
        %s220 = smul.addr %s219, 4
        %s221 = smul.addr %s217, 8
        %s222 = sadd.s32 %s220, %s221
        %s223 = smul.addr %s222, 8
        %s224 = scalar_lea.vmem %s0, %s223
        %p225 = pneg %p54
        %p226 = pneg %p51
        %p227 = pneg %p75
        %p228 = pneg %p72
        %p229 = pneg %p96
        %p230 = pneg %p93
        %p231 = pneg %p117
        %p232 = pneg %p114
        %p233 = pneg %p138
        %p234 = pneg %p135
        %p235 = pneg %p166
        %p236 = pneg %p163
        %s237 = sand.u32 %s153, 1
        %s238 = scalar_lea.sflag [#allocation3], %s237
        %s239 = sand.u32 %s153, 1
        %s240 = smul.addr %s239, 8
        %s241 = scalar_lea.vmem [#allocation2], %s240
        %p242 = scmp.lt.s32.totalorder %s23, 1
        %s243 = scalar_select %p242, %s23, 1
        %p244 = scmp.lt.s32.totalorder %s24, 1
        %s245 = scalar_select %p244, %s24, 1
        %s246 = smul.addr %s245, 4
        %s247 = smul.addr %s243, 8
        %s248 = sadd.s32 %s246, %s247
        %s249 = smul.addr %s248, 8
        %s250 = scalar_lea.vmem %s0, %s249
        %s251 = smul.u32 %s24, 384
        %v252 = vld [vmem:[%s250] sm:$0xff]
        %v253 = vld [vmem:[%s250 + $0x8] sm:$0xff]
        %v254 = vld [vmem:[%s250 + $0x10] sm:$0xf]
        %v255 = vld [vmem:[%s250 + $0x18] sm:$0xf]
        %v256 = vld [vmem:[%s1] sm:$0xff]
        %v257 = vld [vmem:[%s2] sm:$0xff]
        %v258 = vld [vmem:[%s3] sm:$0xff]
        %v259 = vld [vmem:[%s4] sm:$0xff]
        %v260 = vlaneseq
        %v261 = vand.u32 %v260, 127
        %v262 = vadd.s32 %v261, 128
        %v265 = vrot.slane %v252, 4
        %v266 = vrot.slane %v253, 4
        %267 = vrot.lane.b32.xlu0 %v265, 127
        %v268 = vpop.permute.xlu0 %267
        %269 = vrot.lane.b32.xlu0 %v266, 127
        %v270 = vpop.permute.xlu0 %269
        %vm271 = vcmask 1039360
        %v272 = vsel %vm271, %v268, %v270
        %vm275 = vcmask 1043456
        %v276 = vsel %vm275, %v254, %v272
        %v277 = vsel %vm275, %v255, %v270
        %v282 = vrot.slane %v254, 4
        %v283 = vrot.slane %v255, 4
        %286 = vrot.lane.b32.xlu0 %v252, 127
        %v287 = vpop.permute.xlu0 %286
        %288 = vrot.lane.b32.xlu0 %v253, 127
        %v289 = vpop.permute.xlu0 %288
        %v290 = vsel %vm271, %v287, %v289
        %v291 = vsel %vm275, %v265, %v282
        %v292 = vsel %vm275, %v266, %v283
        %294 = vset.pattern.permute.xlu0 0
        %295 = vperm.xlu0 %294, %v257
        %v296 = vpop.permute.xlu0 %295
        %vm298 = vcmask 97280
        %v300 = vsel %vm298, %v256, 0
        %v302 = vsel %vm275, %v272, 0
        %v304 = vsel %vm275, %v270, 0
        %306 = vmatprep.subr.mxu0 %v277
        %307 = vmatpush1.msra.mxu0 %v276
        %308 = vmatprep.subr.mxu0 %v304
        %309 = vmatpush1.msra.mxu0 %v302
        %310 = vmatprep.subr.mxu0 0.0
        %311 = vmatpush1.msra.mxu0 0.0
        %312 = vmatprep.subr.mxu0 0.0
        %313 = vmatpush1.msra.mxu0 0.0
        %314 = vmatprep.subr.mxu0 0.0
        %315 = vmatpush1.msra.mxu0 0.0
        %316 = vmatprep.subr.mxu0 0.0
        %317 = vmatpush1.msra.mxu0 0.0
        %318 = vmatprep.subr.mxu0 0.0
        %319 = vmatpush1.msra.mxu0 0.0
        %320 = vmatprep.subr.mxu0 0.0
        %321 = vmatpush1.msra.mxu0 0.0
        %322 = vmatprep.subr.mxu0 0.0
        %323 = vmatpush1.msra.mxu0 0.0
        %324 = vmatprep.subr.mxu0 0.0
        %325 = vmatpush1.msra.mxu0 0.0
        %326 = vmatprep.subr.mxu0 0.0
        %327 = vmatpush1.msra.mxu0 0.0
        %328 = vmatprep.subr.mxu0 0.0
        %329 = vmatpush1.msra.mxu0 0.0
        %330 = vmatprep.subr.mxu0 0.0
        %331 = vmatpush1.msra.mxu0 0.0
        %332 = vmatprep.subr.mxu0 0.0
        %333 = vmatpush1.msra.mxu0 0.0
        %334 = vmatprep.subr.mxu0 0.0
        %335 = vmatpush1.msra.mxu0 0.0
        %336 = vmatprep.subr.mxu0 0.0
        %337 = vmatpush1.msra.mxu0 0.0
        %338 = vmatprep.subr.mxu0 0.0
        %339 = vmatpush1.msra.mxu0 0.0
        %340 = vmatprep.subr.mxu0 0.0
        %341 = vmatpush1.msra.mxu0 0.0
        %342 = vmatprep.subr.mxu0 0.0
        %343 = vmatpush1.msra.mxu0 0.0
        %344 = vmatprep.subr.mxu0 0.0
        %345 = vmatpush1.msra.mxu0 0.0
        %346 = vmatprep.subr.mxu0 0.0
        %347 = vmatpush1.msra.mxu0 0.0
        %348 = vmatprep.subr.mxu0 0.0
        %349 = vmatpush1.msra.mxu0 0.0
        %350 = vmatprep.subr.mxu0 0.0
        %351 = vmatpush1.msra.mxu0 0.0
        %352 = vmatprep.subr.mxu0 0.0
        %353 = vmatpush1.msra.mxu0 0.0
        %354 = vmatprep.subr.mxu0 0.0
        %355 = vmatpush1.msra.mxu0 0.0
        %356 = vmatprep.subr.mxu0 0.0
        %357 = vmatpush1.msra.mxu0 0.0
        %358 = vmatprep.subr.mxu0 0.0
        %359 = vmatpush1.msra.mxu0 0.0
        %360 = vmatprep.subr.mxu0 0.0
        %361 = vmatpush1.msra.mxu0 0.0
        %362 = vmatprep.subr.mxu0 0.0
        %363 = vmatpush1.msra.mxu0 0.0
        %364 = vmatprep.subr.mxu0 0.0
        %365 = vmatpush1.msra.mxu0 0.0
        %366 = vmatprep.subr.mxu0 0.0
        %367 = vmatpush1.msra.mxu0 0.0
        %368 = vmatprep.subr.mxu0 0.0
        %369 = vmatpush1.msra.mxu0 0.0
        %370 = vmatprep.mubr.f32.mxu0 0.0
        %371 = vmatmul.mubr.f32.gmra.mrb[0].mxu0 %v300
        %v372 = vpop.f32.mrb[0].mxu0
        %v373 = vadd.f32 %v296, %v372
        %v374 = vpop.f32.mrb[0].mxu0
        %v375 = vadd.f32 %v296, %v374
        %376 = vdwg.mxu0
        %vm377 = vcmp.ge.f32.partialorder %v373, 0.0
        %vm378 = vcmp.ge.f32.partialorder %v375, 0.0
        %v379 = vmul.f32 %v373, 0.3
        %v380 = vmul.f32 %v375, 0.3
        %v381 = vsel %vm377, %v373, %v379
        %v382 = vsel %vm378, %v375, %v380
        %s383 = ssub.s32 %s251, 3
        %v384 = vmul.u32 %v261, 3
        %v385 = vmul.u32 %v262, 3
        %v386 = vstv %s383
        %v387 = vadd.s32 %v386, %v384
        %v388 = vadd.s32 %v386, %v385
        %vm389 = vcmp.ge.s32.totalorder %v387, 0
        %vm390 = vcmp.ge.s32.totalorder %v388, 0
        %vm391 = vcmp.lt.s32.totalorder %v387, 751
        %vm392 = vcmp.lt.s32.totalorder %v388, 751
        %vm393 = vmand %vm389, %vm391
        %vm394 = vmand %vm390, %vm392
        %v395 = vsel %vm393, 1, 0
        %v396 = vsel %vm394, 1, 0
        %v397 = vcvt.s32.f32 %v395
        %v398 = vcvt.s32.f32 %v396
        %v399 = vmul.f32 %v381, %v397
        %v400 = vmul.f32 %v382, %v398
        %401 = vrot.lane.b32.xlu0 %v254, 127
        %v402 = vpop.permute.xlu0 %401
        %403 = vrot.lane.b32.xlu0 %v255, 127
        %v404 = vpop.permute.xlu0 %403
        %v405 = vsel %vm271, %v402, %v404
        %v408 = vsel %vm275, %v405, 0
        %v410 = vsel %vm275, %v404, 0
        %412 = vmatprep.subr.mxu0 %v289
        %413 = vmatpush1.msra.mxu0 %v290
        %414 = vmatprep.subr.mxu0 %v410
        %415 = vmatpush1.msra.mxu0 %v408
        %416 = vmatprep.subr.mxu0 0.0
        %417 = vmatpush1.msra.mxu0 0.0
        %418 = vmatprep.subr.mxu0 0.0
        %419 = vmatpush1.msra.mxu0 0.0
        %420 = vmatprep.subr.mxu0 0.0
        %421 = vmatpush1.msra.mxu0 0.0
        %422 = vmatprep.subr.mxu0 0.0
        %423 = vmatpush1.msra.mxu0 0.0
        %424 = vmatprep.subr.mxu0 0.0
        %425 = vmatpush1.msra.mxu0 0.0
        %426 = vmatprep.subr.mxu0 0.0
        %427 = vmatpush1.msra.mxu0 0.0
        %428 = vmatprep.subr.mxu0 0.0
        %429 = vmatpush1.msra.mxu0 0.0
        %430 = vmatprep.subr.mxu0 0.0
        %431 = vmatpush1.msra.mxu0 0.0
        %432 = vmatprep.subr.mxu0 0.0
        %433 = vmatpush1.msra.mxu0 0.0
        %434 = vmatprep.subr.mxu0 0.0
        %435 = vmatpush1.msra.mxu0 0.0
        %436 = vmatprep.subr.mxu0 0.0
        %437 = vmatpush1.msra.mxu0 0.0
        %438 = vmatprep.subr.mxu0 0.0
        %439 = vmatpush1.msra.mxu0 0.0
        %440 = vmatprep.subr.mxu0 0.0
        %441 = vmatpush1.msra.mxu0 0.0
        %442 = vmatprep.subr.mxu0 0.0
        %443 = vmatpush1.msra.mxu0 0.0
        %444 = vmatprep.subr.mxu0 0.0
        %445 = vmatpush1.msra.mxu0 0.0
        %446 = vmatprep.subr.mxu0 0.0
        %447 = vmatpush1.msra.mxu0 0.0
        %448 = vmatprep.subr.mxu0 0.0
        %449 = vmatpush1.msra.mxu0 0.0
        %450 = vmatprep.subr.mxu0 0.0
        %451 = vmatpush1.msra.mxu0 0.0
        %452 = vmatprep.subr.mxu0 0.0
        %453 = vmatpush1.msra.mxu0 0.0
        %454 = vmatprep.subr.mxu0 0.0
        %455 = vmatpush1.msra.mxu0 0.0
        %456 = vmatprep.subr.mxu0 0.0
        %457 = vmatpush1.msra.mxu0 0.0
        %458 = vmatprep.subr.mxu0 0.0
        %459 = vmatpush1.msra.mxu0 0.0
        %460 = vmatprep.subr.mxu0 0.0
        %461 = vmatpush1.msra.mxu0 0.0
        %462 = vmatprep.subr.mxu0 0.0
        %463 = vmatpush1.msra.mxu0 0.0
        %464 = vmatprep.subr.mxu0 0.0
        %465 = vmatpush1.msra.mxu0 0.0
        %466 = vmatprep.subr.mxu0 0.0
        %467 = vmatpush1.msra.mxu0 0.0
        %468 = vmatprep.subr.mxu0 0.0
        %469 = vmatpush1.msra.mxu0 0.0
        %470 = vmatprep.subr.mxu0 0.0
        %471 = vmatpush1.msra.mxu0 0.0
        %472 = vmatprep.subr.mxu0 0.0
        %473 = vmatpush1.msra.mxu0 0.0
        %474 = vmatprep.subr.mxu0 0.0
        %475 = vmatpush1.msra.mxu0 0.0
        %476 = vmatprep.mubr.f32.mxu0 0.0
        %477 = vmatmul.mubr.f32.gmra.mrb[0].mxu0 %v300
        %v478 = vpop.f32.mrb[0].mxu0
        %v479 = vadd.f32 %v296, %v478
        %v480 = vpop.f32.mrb[0].mxu0
        %v481 = vadd.f32 %v296, %v480
        %482 = vdwg.mxu0
        %vm483 = vcmp.ge.f32.partialorder %v479, 0.0
        %vm484 = vcmp.ge.f32.partialorder %v481, 0.0
        %v485 = vmul.f32 %v479, 0.3
        %v486 = vmul.f32 %v481, 0.3
        %v487 = vsel %vm483, %v479, %v485
        %v488 = vsel %vm484, %v481, %v486
        %s489 = sadd.s32 %s251, 4294967294
        %v490 = vstv %s489
        %v491 = vadd.s32 %v490, %v384
        %v492 = vadd.s32 %v490, %v385
        %vm493 = vcmp.ge.s32.totalorder %v491, 0
        %vm494 = vcmp.ge.s32.totalorder %v492, 0
        %vm495 = vcmp.lt.s32.totalorder %v491, 751
        %vm496 = vcmp.lt.s32.totalorder %v492, 751
        %vm497 = vmand %vm493, %vm495
        %vm498 = vmand %vm494, %vm496
        %v499 = vsel %vm497, 1, 0
        %v500 = vsel %vm498, 1, 0
        %v501 = vcvt.s32.f32 %v499
        %v502 = vcvt.s32.f32 %v500
        %v503 = vmul.f32 %v487, %v501
        %v504 = vmul.f32 %v488, %v502
        %507 = vrot.lane.b32.xlu0 %v291, 127
        %v508 = vpop.permute.xlu0 %507
        %509 = vrot.lane.b32.xlu0 %v292, 127
        %v510 = vpop.permute.xlu0 %509
        %511 = vrot.lane.b32.xlu0 %v290, 127
        %v512 = vpop.permute.xlu0 %511
        %513 = vrot.lane.b32.xlu0 %v289, 127
        %v514 = vpop.permute.xlu0 %513
        %v515 = vsel %vm271, %v508, %v510
        %v516 = vsel %vm271, %v512, %v514
        %v519 = vsel %vm275, %v516, 0
        %v521 = vsel %vm275, %v514, 0
        %523 = vmatprep.subr.mxu0 %v510
        %524 = vmatpush1.msra.mxu0 %v515
        %525 = vmatprep.subr.mxu0 %v521
        %526 = vmatpush1.msra.mxu0 %v519
        %527 = vmatprep.subr.mxu0 0.0
        %528 = vmatpush1.msra.mxu0 0.0
        %529 = vmatprep.subr.mxu0 0.0
        %530 = vmatpush1.msra.mxu0 0.0
        %531 = vmatprep.subr.mxu0 0.0
        %532 = vmatpush1.msra.mxu0 0.0
        %533 = vmatprep.subr.mxu0 0.0
        %534 = vmatpush1.msra.mxu0 0.0
        %535 = vmatprep.subr.mxu0 0.0
        %536 = vmatpush1.msra.mxu0 0.0
        %537 = vmatprep.subr.mxu0 0.0
        %538 = vmatpush1.msra.mxu0 0.0
        %539 = vmatprep.subr.mxu0 0.0
        %540 = vmatpush1.msra.mxu0 0.0
        %541 = vmatprep.subr.mxu0 0.0
        %542 = vmatpush1.msra.mxu0 0.0
        %543 = vmatprep.subr.mxu0 0.0
        %544 = vmatpush1.msra.mxu0 0.0
        %545 = vmatprep.subr.mxu0 0.0
        %546 = vmatpush1.msra.mxu0 0.0
        %547 = vmatprep.subr.mxu0 0.0
        %548 = vmatpush1.msra.mxu0 0.0
        %549 = vmatprep.subr.mxu0 0.0
        %550 = vmatpush1.msra.mxu0 0.0
        %551 = vmatprep.subr.mxu0 0.0
        %552 = vmatpush1.msra.mxu0 0.0
        %553 = vmatprep.subr.mxu0 0.0
        %554 = vmatpush1.msra.mxu0 0.0
        %555 = vmatprep.subr.mxu0 0.0
        %556 = vmatpush1.msra.mxu0 0.0
        %557 = vmatprep.subr.mxu0 0.0
        %558 = vmatpush1.msra.mxu0 0.0
        %559 = vmatprep.subr.mxu0 0.0
        %560 = vmatpush1.msra.mxu0 0.0
        %561 = vmatprep.subr.mxu0 0.0
        %562 = vmatpush1.msra.mxu0 0.0
        %563 = vmatprep.subr.mxu0 0.0
        %564 = vmatpush1.msra.mxu0 0.0
        %565 = vmatprep.subr.mxu0 0.0
        %566 = vmatpush1.msra.mxu0 0.0
        %567 = vmatprep.subr.mxu0 0.0
        %568 = vmatpush1.msra.mxu0 0.0
        %569 = vmatprep.subr.mxu0 0.0
        %570 = vmatpush1.msra.mxu0 0.0
        %571 = vmatprep.subr.mxu0 0.0
        %572 = vmatpush1.msra.mxu0 0.0
        %573 = vmatprep.subr.mxu0 0.0
        %574 = vmatpush1.msra.mxu0 0.0
        %575 = vmatprep.subr.mxu0 0.0
        %576 = vmatpush1.msra.mxu0 0.0
        %577 = vmatprep.subr.mxu0 0.0
        %578 = vmatpush1.msra.mxu0 0.0
        %579 = vmatprep.subr.mxu0 0.0
        %580 = vmatpush1.msra.mxu0 0.0
        %581 = vmatprep.subr.mxu0 0.0
        %582 = vmatpush1.msra.mxu0 0.0
        %583 = vmatprep.subr.mxu0 0.0
        %584 = vmatpush1.msra.mxu0 0.0
        %585 = vmatprep.subr.mxu0 0.0
        %586 = vmatpush1.msra.mxu0 0.0
        %587 = vmatprep.mubr.f32.mxu0 0.0
        %588 = vmatmul.mubr.f32.gmra.mrb[0].mxu0 %v300
        %v589 = vpop.f32.mrb[0].mxu0
        %v590 = vadd.f32 %v296, %v589
        %v591 = vpop.f32.mrb[0].mxu0
        %v592 = vadd.f32 %v296, %v591
        %593 = vdwg.mxu0
        %vm594 = vcmp.ge.f32.partialorder %v590, 0.0
        %vm595 = vcmp.ge.f32.partialorder %v592, 0.0
        %v596 = vmul.f32 %v590, 0.3
        %v597 = vmul.f32 %v592, 0.3
        %v598 = vsel %vm594, %v590, %v596
        %v599 = vsel %vm595, %v592, %v597
        %s600 = sadd.s32 %s251, 4294967295
        %v601 = vstv %s600
        %v602 = vadd.s32 %v601, %v384
        %v603 = vadd.s32 %v601, %v385
        %vm604 = vcmp.ge.s32.totalorder %v602, 0
        %vm605 = vcmp.ge.s32.totalorder %v603, 0
        %vm606 = vcmp.lt.s32.totalorder %v602, 751
        %vm607 = vcmp.lt.s32.totalorder %v603, 751
        %vm608 = vmand %vm604, %vm606
        %vm609 = vmand %vm605, %vm607
        %v610 = vsel %vm608, 1, 0
        %v611 = vsel %vm609, 1, 0
        %v612 = vcvt.s32.f32 %v610
        %v613 = vcvt.s32.f32 %v611
        %v614 = vmul.f32 %v598, %v612
        %v615 = vmul.f32 %v599, %v613
        %618 = vrot.lane.b32.xlu0 %v399, 127
        %v619 = vpop.permute.xlu0 %618
        %620 = vrot.lane.b32.xlu0 %v400, 127
        %v621 = vpop.permute.xlu0 %620
        %v622 = vsel %vm271, %v619, %v621
        %626 = vrot.lane.b32.xlu0 %v503, 127
        %v627 = vpop.permute.xlu0 %626
        %628 = vrot.lane.b32.xlu0 %v504, 127
        %v629 = vpop.permute.xlu0 %628
        %v630 = vsel %vm271, %v627, %v629
        %632 = vrot.lane.b32.xlu0 %v252, 126
        %v633 = vpop.permute.xlu0 %632
        %634 = vrot.lane.b32.xlu0 %v253, 126
        %v635 = vpop.permute.xlu0 %634
        %vm636 = vcmask 1031168
        %v637 = vsel %vm636, %v633, %v635
        %639 = vset.pattern.permute.xlu0 0
        %640 = vperm.xlu0 %639, %v259
        %v641 = vpop.permute.xlu0 %640
        %vm643 = vcmask 228352
        %v645 = vsel %vm643, %v258, 0
        %v647 = vsel %vm275, %v637, 0
        %649 = vmatprep.subr.mxu0 0.0
        %650 = vmatpush1.msra.mxu0 %v614
        %651 = vmatprep.subr.mxu0 0.0
        %652 = vmatpush1.msra.mxu0 %v622
        %653 = vmatprep.subr.mxu0 0.0
        %654 = vmatpush1.msra.mxu0 %v630
        %655 = vmatprep.subr.mxu0 0.0
        %656 = vmatpush1.msra.mxu0 %v647
        %657 = vmatprep.subr.mxu0 0.0
        %658 = vmatpush1.msra.mxu0 0.0
        %659 = vmatprep.subr.mxu0 0.0
        %660 = vmatpush1.msra.mxu0 0.0
        %661 = vmatprep.subr.mxu0 0.0
        %662 = vmatpush1.msra.mxu0 0.0
        %663 = vmatprep.subr.mxu0 0.0
        %664 = vmatpush1.msra.mxu0 0.0
        %665 = vmatprep.subr.mxu0 0.0
        %666 = vmatpush1.msra.mxu0 0.0
        %667 = vmatprep.subr.mxu0 0.0
        %668 = vmatpush1.msra.mxu0 0.0
        %669 = vmatprep.subr.mxu0 0.0
        %670 = vmatpush1.msra.mxu0 0.0
        %671 = vmatprep.subr.mxu0 0.0
        %672 = vmatpush1.msra.mxu0 0.0
        %673 = vmatprep.subr.mxu0 0.0
        %674 = vmatpush1.msra.mxu0 0.0
        %675 = vmatprep.subr.mxu0 0.0
        %676 = vmatpush1.msra.mxu0 0.0
        %677 = vmatprep.subr.mxu0 0.0
        %678 = vmatpush1.msra.mxu0 0.0
        %679 = vmatprep.subr.mxu0 0.0
        %680 = vmatpush1.msra.mxu0 0.0
        %681 = vmatprep.subr.mxu0 0.0
        %682 = vmatpush1.msra.mxu0 0.0
        %683 = vmatprep.subr.mxu0 0.0
        %684 = vmatpush1.msra.mxu0 0.0
        %685 = vmatprep.subr.mxu0 0.0
        %686 = vmatpush1.msra.mxu0 0.0
        %687 = vmatprep.subr.mxu0 0.0
        %688 = vmatpush1.msra.mxu0 0.0
        %689 = vmatprep.subr.mxu0 0.0
        %690 = vmatpush1.msra.mxu0 0.0
        %691 = vmatprep.subr.mxu0 0.0
        %692 = vmatpush1.msra.mxu0 0.0
        %693 = vmatprep.subr.mxu0 0.0
        %694 = vmatpush1.msra.mxu0 0.0
        %695 = vmatprep.subr.mxu0 0.0
        %696 = vmatpush1.msra.mxu0 0.0
        %697 = vmatprep.subr.mxu0 0.0
        %698 = vmatpush1.msra.mxu0 0.0
        %699 = vmatprep.subr.mxu0 0.0
        %700 = vmatpush1.msra.mxu0 0.0
        %701 = vmatprep.subr.mxu0 0.0
        %702 = vmatpush1.msra.mxu0 0.0
        %703 = vmatprep.subr.mxu0 0.0
        %704 = vmatpush1.msra.mxu0 0.0
        %705 = vmatprep.subr.mxu0 0.0
        %706 = vmatpush1.msra.mxu0 0.0
        %707 = vmatprep.subr.mxu0 0.0
        %708 = vmatpush1.msra.mxu0 0.0
        %709 = vmatprep.subr.mxu0 0.0
        %710 = vmatpush1.msra.mxu0 0.0
        %711 = vmatprep.subr.mxu0 0.0
        %712 = vmatpush1.msra.mxu0 0.0
        %713 = vmatprep.mubr.f32.mxu0 0.0
        %714 = vmatmul.mubr.f32.gmra.mrb[0].mxu0 %v645
        %v715 = vpop.f32.mrb[0].mxu0
        %v716 = vadd.f32 %v641, %v715
        %v717 = vpop.f32.mrb[0].mxu0
        %718 = vdwg.mxu0
        %721 = vrot.lane.b32.xlu0 %v614, 127
        %v722 = vpop.permute.xlu0 %721
        %723 = vrot.lane.b32.xlu0 %v615, 127
        %v724 = vpop.permute.xlu0 %723
        %725 = vrot.lane.b32.xlu0 %v272, 127
        %v726 = vpop.permute.xlu0 %725
        %727 = vrot.lane.b32.xlu0 %v270, 127
        %v728 = vpop.permute.xlu0 %727
        %v729 = vsel %vm271, %v722, %v724
        %v730 = vsel %vm271, %v726, %v728
        %v732 = vsel %vm275, %v730, 0
        %734 = vmatprep.subr.mxu0 0.0
        %735 = vmatpush1.msra.mxu0 %v622
        %736 = vmatprep.subr.mxu0 0.0
        %737 = vmatpush1.msra.mxu0 %v630
        %738 = vmatprep.subr.mxu0 0.0
        %739 = vmatpush1.msra.mxu0 %v729
        %740 = vmatprep.subr.mxu0 0.0
        %741 = vmatpush1.msra.mxu0 %v732
        %742 = vmatprep.subr.mxu0 0.0
        %743 = vmatpush1.msra.mxu0 0.0
        %744 = vmatprep.subr.mxu0 0.0
        %745 = vmatpush1.msra.mxu0 0.0
        %746 = vmatprep.subr.mxu0 0.0
        %747 = vmatpush1.msra.mxu0 0.0
        %748 = vmatprep.subr.mxu0 0.0
        %749 = vmatpush1.msra.mxu0 0.0
        %750 = vmatprep.subr.mxu0 0.0
        %751 = vmatpush1.msra.mxu0 0.0
        %752 = vmatprep.subr.mxu0 0.0
        %753 = vmatpush1.msra.mxu0 0.0
        %754 = vmatprep.subr.mxu0 0.0
        %755 = vmatpush1.msra.mxu0 0.0
        %756 = vmatprep.subr.mxu0 0.0
        %757 = vmatpush1.msra.mxu0 0.0
        %758 = vmatprep.subr.mxu0 0.0
        %759 = vmatpush1.msra.mxu0 0.0
        %760 = vmatprep.subr.mxu0 0.0
        %761 = vmatpush1.msra.mxu0 0.0
        %762 = vmatprep.subr.mxu0 0.0
        %763 = vmatpush1.msra.mxu0 0.0
        %764 = vmatprep.subr.mxu0 0.0
        %765 = vmatpush1.msra.mxu0 0.0
        %766 = vmatprep.subr.mxu0 0.0
        %767 = vmatpush1.msra.mxu0 0.0
        %768 = vmatprep.subr.mxu0 0.0
        %769 = vmatpush1.msra.mxu0 0.0
        %770 = vmatprep.subr.mxu0 0.0
        %771 = vmatpush1.msra.mxu0 0.0
        %772 = vmatprep.subr.mxu0 0.0
        %773 = vmatpush1.msra.mxu0 0.0
        %774 = vmatprep.subr.mxu0 0.0
        %775 = vmatpush1.msra.mxu0 0.0
        %776 = vmatprep.subr.mxu0 0.0
        %777 = vmatpush1.msra.mxu0 0.0
        %778 = vmatprep.subr.mxu0 0.0
        %779 = vmatpush1.msra.mxu0 0.0
        %780 = vmatprep.subr.mxu0 0.0
        %781 = vmatpush1.msra.mxu0 0.0
        %782 = vmatprep.subr.mxu0 0.0
        %783 = vmatpush1.msra.mxu0 0.0
        %784 = vmatprep.subr.mxu0 0.0
        %785 = vmatpush1.msra.mxu0 0.0
        %786 = vmatprep.subr.mxu0 0.0
        %787 = vmatpush1.msra.mxu0 0.0
        %788 = vmatprep.subr.mxu0 0.0
        %789 = vmatpush1.msra.mxu0 0.0
        %790 = vmatprep.subr.mxu0 0.0
        %791 = vmatpush1.msra.mxu0 0.0
        %792 = vmatprep.subr.mxu0 0.0
        %793 = vmatpush1.msra.mxu0 0.0
        %794 = vmatprep.subr.mxu0 0.0
        %795 = vmatpush1.msra.mxu0 0.0
        %796 = vmatprep.subr.mxu0 0.0
        %797 = vmatpush1.msra.mxu0 0.0
        %798 = vmatprep.mubr.f32.mxu0 0.0
        %799 = vmatmul.mubr.f32.gmra.mrb[0].mxu0 %v645
        %v800 = vpop.f32.mrb[0].mxu0
        %v801 = vadd.f32 %v641, %v800
        %v802 = vpop.f32.mrb[0].mxu0
        %803 = vdwg.mxu0
        %804 = vrot.lane.b32.xlu0 %v622, 127
        %v805 = vpop.permute.xlu0 %804
        %806 = vrot.lane.b32.xlu0 %v621, 127
        %v807 = vpop.permute.xlu0 %806
        %808 = vrot.lane.b32.xlu0 %v405, 127
        %v809 = vpop.permute.xlu0 %808
        %810 = vrot.lane.b32.xlu0 %v404, 127
        %v811 = vpop.permute.xlu0 %810
        %v812 = vsel %vm271, %v805, %v807
        %v813 = vsel %vm271, %v809, %v811
        %v815 = vsel %vm275, %v813, 0
        %817 = vmatprep.subr.mxu0 0.0
        %818 = vmatpush1.msra.mxu0 %v630
        %819 = vmatprep.subr.mxu0 0.0
        %820 = vmatpush1.msra.mxu0 %v729
        %821 = vmatprep.subr.mxu0 0.0
        %822 = vmatpush1.msra.mxu0 %v812
        %823 = vmatprep.subr.mxu0 0.0
        %824 = vmatpush1.msra.mxu0 %v815
        %825 = vmatprep.subr.mxu0 0.0
        %826 = vmatpush1.msra.mxu0 0.0
        %827 = vmatprep.subr.mxu0 0.0
        %828 = vmatpush1.msra.mxu0 0.0
        %829 = vmatprep.subr.mxu0 0.0
        %830 = vmatpush1.msra.mxu0 0.0
        %831 = vmatprep.subr.mxu0 0.0
        %832 = vmatpush1.msra.mxu0 0.0
        %833 = vmatprep.subr.mxu0 0.0
        %834 = vmatpush1.msra.mxu0 0.0
        %835 = vmatprep.subr.mxu0 0.0
        %836 = vmatpush1.msra.mxu0 0.0
        %837 = vmatprep.subr.mxu0 0.0
        %838 = vmatpush1.msra.mxu0 0.0
        %839 = vmatprep.subr.mxu0 0.0
        %840 = vmatpush1.msra.mxu0 0.0
        %841 = vmatprep.subr.mxu0 0.0
        %842 = vmatpush1.msra.mxu0 0.0
        %843 = vmatprep.subr.mxu0 0.0
        %844 = vmatpush1.msra.mxu0 0.0
        %845 = vmatprep.subr.mxu0 0.0
        %846 = vmatpush1.msra.mxu0 0.0
        %847 = vmatprep.subr.mxu0 0.0
        %848 = vmatpush1.msra.mxu0 0.0
        %849 = vmatprep.subr.mxu0 0.0
        %850 = vmatpush1.msra.mxu0 0.0
        %851 = vmatprep.subr.mxu0 0.0
        %852 = vmatpush1.msra.mxu0 0.0
        %853 = vmatprep.subr.mxu0 0.0
        %854 = vmatpush1.msra.mxu0 0.0
        %855 = vmatprep.subr.mxu0 0.0
        %856 = vmatpush1.msra.mxu0 0.0
        %857 = vmatprep.subr.mxu0 0.0
        %858 = vmatpush1.msra.mxu0 0.0
        %859 = vmatprep.subr.mxu0 0.0
        %860 = vmatpush1.msra.mxu0 0.0
        %861 = vmatprep.subr.mxu0 0.0
        %862 = vmatpush1.msra.mxu0 0.0
        %863 = vmatprep.subr.mxu0 0.0
        %864 = vmatpush1.msra.mxu0 0.0
        %865 = vmatprep.subr.mxu0 0.0
        %866 = vmatpush1.msra.mxu0 0.0
        %867 = vmatprep.subr.mxu0 0.0
        %868 = vmatpush1.msra.mxu0 0.0
        %869 = vmatprep.subr.mxu0 0.0
        %870 = vmatpush1.msra.mxu0 0.0
        %871 = vmatprep.subr.mxu0 0.0
        %872 = vmatpush1.msra.mxu0 0.0
        %873 = vmatprep.subr.mxu0 0.0
        %874 = vmatpush1.msra.mxu0 0.0
        %875 = vmatprep.subr.mxu0 0.0
        %876 = vmatpush1.msra.mxu0 0.0
        %877 = vmatprep.subr.mxu0 0.0
        %878 = vmatpush1.msra.mxu0 0.0
        %879 = vmatprep.subr.mxu0 0.0
        %880 = vmatpush1.msra.mxu0 0.0
        %881 = vmatprep.mubr.f32.mxu0 0.0
        %882 = vmatmul.mubr.f32.gmra.mrb[0].mxu0 %v645
        %v883 = vpop.f32.mrb[0].mxu0
        %v884 = vadd.f32 %v641, %v883
        %v885 = vpop.f32.mrb[0].mxu0
        %886 = vdwg.mxu0
        %v887 = vmax.f32 %v716, %v801
        %v888 = vmax.f32 %v887, %v884
        %889 = vst [vmem:[%s241] sm:$0xff] %v888
        %s890 = sand.u32 %s153, 1
        %s891 = scalar_lea.sflag [#allocation3], %s890
        %s892 = sand.u32 %s153, 1
        %s893 = smul.addr %s892, 8
        %s894 = scalar_lea.vmem [#allocation2], %s893
        // Predicated region
        $region41: #{tpu_custom_call.1} parent=39 // pred_check
          %p895 = pneg %p163
        $region42: #{tpu_custom_call.1} parent=39 // pred_check_branch
          %897 = sbr.rel (%p895) target = $region44
        $region43: #{tpu_custom_call.1} parent=39 // pred_region
          %s899 = ssub.s32 128, 128
          %900 = vsyncadd %s891, %s899
          %s901 = smul.addr %s23, 2
          %s902 = sadd.s32 %s24, %s901
          %s903 = smul.addr %s902, 128
          %s904 = scalar_lea.hbm %s5, %s903
          %s906 = sshll.u32 %s894, 4
          %s907 = int_to_ptr.vmem [resolvable:$true] %s906
          %909 = dma.vmem_to_hbm [thread:$0]  %s907, 128, %s904, %s891
        $region44: #{tpu_custom_call.1} parent=39 // pred_fallthru
          _
      $region40: #{tpu_custom_call.1} parent=5 // pred_fallthru
        _
      %p910 = scmp.le.s32.totalorder 2, %s14
      // Predicated region
      $region45: #{tpu_custom_call.1} parent=5 // pred_check
        %p911 = pneg %p910
      $region46: #{tpu_custom_call.1} parent=5 // pred_check_branch
        %913 = sbr.rel (%p911) target = $region48
      $region47: #{tpu_custom_call.1} parent=5 // pred_region
        %s914 = ssub.s32 %s14, 2
        // Predicated region
        $region49: #{tpu_custom_call.1} parent=47 // pred_check
          %p915 = pneg %p169
        $region50: #{tpu_custom_call.1} parent=47 // pred_check_branch
          %917 = sbr.rel (%p915) target = $region52
        $region51: #{tpu_custom_call.1} parent=47 // pred_region
          %s918 = sand.u32 %s154, 1
          %s919 = scalar_lea.sflag [#allocation3], %s918
          %s920 = sand.u32 %s154, 1
          %s921 = smul.addr %s920, 8
          %s922 = scalar_lea.vmem [#allocation2], %s921
          %923 = dma.done %s919, 128
        $region52: #{tpu_custom_call.1} parent=47 // pred_fallthru
          _
      $region48: #{tpu_custom_call.1} parent=5 // pred_fallthru
        _
    $region6: #{tpu_custom_call.1} parent=1 // loop_footer
      %s18 = sadd.s32 1, %s14
    $region7: #{tpu_custom_call.1} parent=1 // loop_footer_branch
      %13 = sbr.rel target = $region3
    $region8: #{tpu_custom_call.1} parent=1 // loop_exit
      _
    %924 = vsyncpa [#allocation3], 1
    %s925 = scalar_lea.sflag [#allocation3], 1
    %926 = vsyncpa %s925, 1

</llo_original>
